<compile_context>
chip_gen: v6e
topology: v6e:2x2x1
jax: 0.10.0
libtpu: 0.0.40
codegen_flags: <defaults>
</compile_context>

<pallas_src>
import functools

import jax
import jax.numpy as jnp
from jax.experimental import pallas as pl
from jax.experimental.pallas import tpu as pltpu

LANES = 128
SUBLANES = 8


def _round_up(x, m):
    return ((x + m - 1) // m) * m


def _loss_kernel(pred_ref, tgt_ref, prob_ref, out_ref, *,
                 block_rows, tail_valid, mask_last):
    x = pred_ref[...].astype(jnp.float32)
    # sigmoid(x) == 0.5*(1 + tanh(x/2)): single EUP push instead of exp+recip.
    s = 0.5 * (1.0 + jnp.tanh(0.5 * x))
    p = prob_ref[...].astype(jnp.float32)
    t = tgt_ref[...].astype(jnp.float32)

    # q = p*(1-s) + (1-p)*s ; posterior = (t==1) ? q : 1-q
    q = p + s - 2.0 * p * s
    posterior = jnp.where(t == 1.0, q, 1.0 - q)
    vals = -jnp.log(posterior)                               # (block_rows, 128)
    # TODO(synk): no clamp before the log (matches the PyTorch reference, which
    # also returns inf for posterior == 0).

    def _reduce_store(v):
        # Lane-resident partial reduction down to one (8,128) f32 slab.
        # Reduce through a (32,128) slab (4 vregs) first so the adds form 4
        # independent dependency chains, then fold the 4 sub-slabs.
        if block_rows % 32 == 0 and block_rows >= 32:
            s32 = v.reshape(block_rows // 32, 4 * SUBLANES, LANES).sum(axis=0)
            partial = s32.reshape(4, SUBLANES, LANES).sum(axis=0)
        else:
            partial = v.reshape(block_rows // SUBLANES, SUBLANES, LANES).sum(axis=0)
        out_ref[...] = partial[None]                         # (1, 8, 128)

    if mask_last:
        last = pl.num_programs(0) - 1

        @pl.when(pl.program_id(0) != last)
        def _():
            _reduce_store(vals)

        @pl.when(pl.program_id(0) == last)
        def _():
            # Block-local element index: bounded by block_rows*128, so it can
            # never overflow int32 no matter how large the full input is.
            row_ids = jax.lax.broadcasted_iota(jnp.int32, (block_rows, LANES), 0)
            lane_ids = jax.lax.broadcasted_iota(jnp.int32, (block_rows, LANES), 1)
            lidx = row_ids * LANES + lane_ids
            _reduce_store(jnp.where(lidx < tail_valid, vals, 0.0))
    else:
        _reduce_store(vals)


def noisy_bce_loss(predictions, target, probabilities, *, block_rows=4096):
    """Pallas equivalent of forward_method_time.forward -> scalar f32 loss."""
    pred_f = predictions.reshape(-1)
    tgt_f = target.reshape(-1)
    prob_f = probabilities.reshape(-1)
    n = int(pred_f.shape[0])

    # Only pad when n is not a multiple of 128 (needed for the (rows,128)
    # view); the pad is < 128 elements and padded values are masked in-kernel.
    # Lane-aligned inputs take a zero-copy reshape path.
    rem = n % LANES
    if rem:
        pad = LANES - rem
        pred_f = jnp.pad(pred_f, (0, pad))
        tgt_f = jnp.pad(tgt_f, (0, pad))
        prob_f = jnp.pad(prob_f, (0, pad))
    rows = pred_f.shape[0] // LANES

    # Tile sizing: as large as requested (multiple of 8 rows); if more than
    # one block, balance the blocks and keep the count even so v7x's two
    # TensorCores split the parallel axis evenly.
    block_rows = max(SUBLANES, min(block_rows, _round_up(rows, SUBLANES)))
    block_rows = (block_rows // SUBLANES) * SUBLANES
    num_blocks = pl.cdiv(rows, block_rows)
    if num_blocks > 1:
        if num_blocks % 2:
            num_blocks += 1
        block_rows = _round_up(pl.cdiv(rows, num_blocks), SUBLANES)
        num_blocks = pl.cdiv(rows, block_rows)

    block_elems = block_rows * LANES
    tail_valid = n - (num_blocks - 1) * block_elems   # valid elems in last block
    mask_last = tail_valid < block_elems

    pred2 = pred_f.reshape(rows, LANES)
    tgt2 = tgt_f.reshape(rows, LANES)
    prob2 = prob_f.reshape(rows, LANES)

    blk = pl.BlockSpec((block_rows, LANES), lambda i: (i, 0))
    kernel = functools.partial(_loss_kernel, block_rows=block_rows,
                               tail_valid=tail_valid, mask_last=mask_last)

    itemsizes = (pred2.dtype.itemsize + tgt2.dtype.itemsize
                 + prob2.dtype.itemsize)
    in_bytes = itemsizes * rows * LANES
    out_bytes = num_blocks * SUBLANES * LANES * 4
    cost = pl.CostEstimate(flops=10 * n,
                           transcendentals=2 * n,            # tanh + log
                           bytes_accessed=in_bytes + out_bytes)

    # Double-buffered input tiles + headroom; explicit so 4096-row tiles fit
    # on v5e's 16 MiB scoped-VMEM default too.
    tile_bytes = block_elems * itemsizes
    vmem_limit = int(min(100 << 20, max(16 << 20, 2 * tile_bytes + (8 << 20))))

    partials = pl.pallas_call(
        kernel,
        out_shape=jax.ShapeDtypeStruct((num_blocks, SUBLANES, LANES), jnp.float32),
        grid_spec=pltpu.PrefetchScalarGridSpec(
            num_scalar_prefetch=0,
            grid=(num_blocks,),
            in_specs=[blk, blk, blk],
            out_specs=pl.BlockSpec((1, SUBLANES, LANES), lambda i: (i, 0, 0)),
        ),
        compiler_params=pltpu.CompilerParams(
            dimension_semantics=("parallel",),
            vmem_limit_bytes=vmem_limit),
        cost_estimate=cost,
    )(pred2, tgt2, prob2)

    # Tiny final reduce + mean over the true (unpadded) element count.
    return jnp.sum(partials) / jnp.float32(n)


def _reference(predictions, target, probabilities):
    s = jax.nn.sigmoid(predictions.reshape(-1).astype(jnp.float32))
    t = target.reshape(-1).astype(jnp.float32)
    p = probabilities.reshape(-1).astype(jnp.float32)
    posterior = jnp.where(t == 1.0,
                          p * (1 - s) + (1 - p) * s,
                          (1 - p) * (1 - s) + p * s)
    return -jnp.log(posterior).mean()


if __name__ == "__main__":
    key = jax.random.PRNGKey(0)

    # Test 1: lane-aligned shape (batch=2, channels=4, spatial=16x16 -> 2048).
    k1, k2, k3, k4, k5, k6, k7, k8, k9 = jax.random.split(key, 9)
    shape = (2, 4, 16, 16)
    predictions = jax.random.normal(k1, shape, dtype=jnp.float32)
    target = jax.random.bernoulli(k2, 0.5, shape).astype(jnp.float32)
    probabilities = jax.random.uniform(k3, shape, dtype=jnp.float32,
                                       minval=0.05, maxval=0.45)
    loss = jax.block_until_ready(noisy_bce_loss(predictions, target, probabilities))
    ref = _reference(predictions, target, probabilities)
    assert jnp.allclose(loss, ref, rtol=1e-5, atol=1e-5), (loss, ref)

    # Test 2: non-lane-aligned element count (exercises pad + tail masking).
    shape2 = (3, 5, 7)   # 105 elements
    predictions2 = jax.random.normal(k4, shape2, dtype=jnp.float32)
    target2 = jax.random.bernoulli(k5, 0.5, shape2).astype(jnp.float32)
    probabilities2 = jax.random.uniform(k6, shape2, dtype=jnp.float32,
                                        minval=0.05, maxval=0.45)
    loss2 = jax.block_until_ready(noisy_bce_loss(predictions2, target2, probabilities2))
    ref2 = _reference(predictions2, target2, probabilities2)
    assert jnp.allclose(loss2, ref2, rtol=1e-5, atol=1e-5), (loss2, ref2)

    # Test 3: lane-aligned but ragged rows with a small forced tile size
    # (exercises multi-block grid + last-block-only masking, no pad copy).
    shape3 = (2, 4, 16, 17)   # 2176 elements -> 17 rows of 128
    predictions3 = jax.random.normal(k7, shape3, dtype=jnp.float32)
    target3 = jax.random.bernoulli(k8, 0.5, shape3).astype(jnp.float32)
    probabilities3 = jax.random.uniform(k9, shape3, dtype=jnp.float32,
                                        minval=0.05, maxval=0.45)
    loss3 = jax.block_until_ready(
        noisy_bce_loss(predictions3, target3, probabilities3, block_rows=16))
    ref3 = _reference(predictions3, target3, probabilities3)
    assert jnp.allclose(loss3, ref3, rtol=1e-5, atol=1e-5), (loss3, ref3)

    print("KERNEL_OK")
</pallas_src>

<mosaic_0001>
module attributes {stable_mosaic.version = 11 : i64} {
  func.func @_loss_kernel(%arg0: i32, %arg1: memref<16x128xf32, #tpu.memory_space<vmem>>, %arg2: memref<16x128xf32, #tpu.memory_space<vmem>>, %arg3: memref<16x128xf32, #tpu.memory_space<vmem>>, %arg4: memref<1x8x128xf32, #tpu.memory_space<vmem>>) attributes {dimension_semantics = [#tpu.dimension_semantics<parallel>], iteration_bounds = array<i64: 1>, scalar_prefetch = 0 : i64, scratch_operands = 0 : i64, tpu.core_type = #tpu.core_type<tc>, window_params = [{transform_indices = @transform_0, window_bounds = array<i64: 16, 128>}, {transform_indices = @transform_1, window_bounds = array<i64: 16, 128>}, {transform_indices = @transform_2, window_bounds = array<i64: 16, 128>}, {transform_indices = @transform_3, window_bounds = array<i64: 1, 8, 128>}]} {
    %c0 = arith.constant 0 : index
    %c0_0 = arith.constant 0 : index
    %0 = vector.load %arg1[%c0, %c0_0] : memref<16x128xf32, #tpu.memory_space<vmem>>, vector<16x128xf32>
    %cst = arith.constant 5.000000e-01 : f32
    %1 = vector.broadcast %cst : f32 to vector<16x128xf32>
    %2 = arith.mulf %1, %0 : vector<16x128xf32>
    %3 = math.tanh %2 : vector<16x128xf32>
    %cst_1 = arith.constant 1.000000e+00 : f32
    %4 = vector.broadcast %cst_1 : f32 to vector<16x128xf32>
    %5 = arith.addf %4, %3 : vector<16x128xf32>
    %cst_2 = arith.constant 5.000000e-01 : f32
    %6 = vector.broadcast %cst_2 : f32 to vector<16x128xf32>
    %7 = arith.mulf %6, %5 : vector<16x128xf32>
    %c0_3 = arith.constant 0 : index
    %c0_4 = arith.constant 0 : index
    %8 = vector.load %arg3[%c0_3, %c0_4] : memref<16x128xf32, #tpu.memory_space<vmem>>, vector<16x128xf32>
    %c0_5 = arith.constant 0 : index
    %c0_6 = arith.constant 0 : index
    %9 = vector.load %arg2[%c0_5, %c0_6] : memref<16x128xf32, #tpu.memory_space<vmem>>, vector<16x128xf32>
    %10 = arith.addf %8, %7 : vector<16x128xf32>
    %cst_7 = arith.constant 2.000000e+00 : f32
    %11 = vector.broadcast %cst_7 : f32 to vector<16x128xf32>
    %12 = arith.mulf %11, %8 : vector<16x128xf32>
    %13 = arith.mulf %12, %7 : vector<16x128xf32>
    %14 = arith.subf %10, %13 : vector<16x128xf32>
    %cst_8 = arith.constant 1.000000e+00 : f32
    %15 = vector.broadcast %cst_8 : f32 to vector<16x128xf32>
    %16 = arith.cmpf oeq, %9, %15 : vector<16x128xf32>
    %cst_9 = arith.constant 1.000000e+00 : f32
    %17 = vector.broadcast %cst_9 : f32 to vector<16x128xf32>
    %18 = arith.subf %17, %14 : vector<16x128xf32>
    %19 = arith.select %16, %14, %18 : vector<16x128xi1>, vector<16x128xf32>
    %20 = math.log %19 : vector<16x128xf32>
    %cst_10 = arith.constant 0.000000e+00 : f32
    %21 = vector.broadcast %cst_10 : f32 to vector<16x128xf32>
    %22 = arith.subf %21, %20 : vector<16x128xf32>
    %23 = vector.shape_cast %22 : vector<16x128xf32> to vector<2x8x128xf32>
    %cst_11 = arith.constant dense<0.000000e+00> : vector<8x128xf32>
    %24 = vector.multi_reduction <add>, %23, %cst_11 [0] : vector<2x8x128xf32> to vector<8x128xf32>
    %25 = vector.shape_cast %24 : vector<8x128xf32> to vector<1x8x128xf32>
    %c0_12 = arith.constant 0 : index
    %c0_13 = arith.constant 0 : index
    %c0_14 = arith.constant 0 : index
    %26 = vector.load %arg4[%c0_12, %c0_13, %c0_14] : memref<1x8x128xf32, #tpu.memory_space<vmem>>, vector<1x8x128xf32>
    tpu.vector_store %arg4[%c0_12, %c0_13, %c0_14], %25 {strides = array<i32>} : memref<1x8x128xf32, #tpu.memory_space<vmem>>, vector<1x8x128xf32>,
    return
  }
  func.func @transform_0(%arg0: i32) -> (i32, i32) {
    %c0_i32 = arith.constant 0 : i32
    %c0_i32_0 = arith.constant 0 : i32
    return %arg0, %c0_i32 : i32, i32
  }
  func.func @transform_1(%arg0: i32) -> (i32, i32) {
    %c0_i32 = arith.constant 0 : i32
    %c0_i32_0 = arith.constant 0 : i32
    return %arg0, %c0_i32 : i32, i32
  }
  func.func @transform_2(%arg0: i32) -> (i32, i32) {
    %c0_i32 = arith.constant 0 : i32
    %c0_i32_0 = arith.constant 0 : i32
    return %arg0, %c0_i32 : i32, i32
  }
  func.func @transform_3(%arg0: i32) -> (i32, i32, i32) {
    %c0_i32 = arith.constant 0 : i32
    %c0_i32_0 = arith.constant 0 : i32
    %c0_i32_1 = arith.constant 0 : i32
    return %arg0, %c0_i32, %c0_i32_0 : i32, i32, i32
  }
}

</mosaic_0001>

<llo_original>
// kernel: tpu_custom_call.1
$region0: #{tpu_custom_call.1}
  #allocation0 [shape = 'u32[]', space=smem, size = 0x4, offset = 0x4, fixed_abs, tag = 'smem constant byte address 0x4 - core index']
  #allocation1 [shape = 'u32[144,128]{1,0:T(1,128)}', space=vmem, size = 0x12000, scoped, tag = 'internal scratch']
  %s0 = inlined_call_operand.hbm [shape: f32[16,128], index: 0, kind: input, shape index: {}]
  %s1 = inlined_call_operand.hbm [shape: f32[16,128], index: 1, kind: input, shape index: {}]
  %s2 = inlined_call_operand.hbm [shape: f32[16,128], index: 2, kind: input, shape index: {}]
  %s3 = inlined_call_operand.hbm [shape: f32[1,8,128], index: 3, kind: output, shape index: {}]
  %s4 = sld [smem:[#allocation0]]
  $region34: #{tpu_custom_call.1} parent=0
    _
  %s6 = ssub.s32 1, %s4
  %s7 = scalar_select 0, %s6, %s4
  $region1: #{tpu_custom_call.1} parent=0
    #allocation2 [shape = 'u8[8192]{0}', space=vmem, size = 0x2000, scoped, tag = 'input window, operand 0, single buffered']
    #allocation3 [shape = 's32[1]{0}', space=sflag, size = 0x4, scoped, tag = 'scoped memory for tpu_custom_call.1']
    #allocation4 [shape = 's32[1]{0}', space=sflag, size = 0x4, scoped, tag = 'scoped memory for tpu_custom_call.1']
    #allocation5 [shape = 'u8[8192]{0}', space=vmem, size = 0x2000, scoped, tag = 'input window, operand 1, single buffered']
    #allocation6 [shape = 's32[1]{0}', space=sflag, size = 0x4, scoped, tag = 'scoped memory for tpu_custom_call.1']
    #allocation7 [shape = 'u8[8192]{0}', space=vmem, size = 0x2000, scoped, tag = 'input window, operand 2, single buffered']
    #allocation8 [shape = 'u8[4096]{0}', space=vmem, size = 0x1000, scoped, tag = 'output window, operand 0, single buffered']
    %8 = vsyncpa [#allocation3], 0
    %9 = vsyncpa [#allocation6], 0
    %10 = vsyncpa [#allocation4], 0
    // Predicated region
    $region2: #{tpu_custom_call.1} parent=1 // pred_check
      _
    $region3: #{tpu_custom_call.1} parent=1 // pred_check_branch
      %12 = sbr.rel (0) target = $region5
    $region4: #{tpu_custom_call.1} parent=1 // pred_region
      %s14 = ssub.s32 256, 256
      %15 = vsyncadd [#allocation3], %s14
      %s16 = sshll.u32 [#allocation2], 4
      %s17 = int_to_ptr.vmem [resolvable:$true] %s16
      %22 = dma.hbm_to_vmem [thread:$0]  %s0, 256, %s17, [#allocation3], 128, 128, 8
    $region5: #{tpu_custom_call.1} parent=1 // pred_fallthru
      _
    // Predicated region
    $region6: #{tpu_custom_call.1} parent=1 // pred_check
      _
    $region7: #{tpu_custom_call.1} parent=1 // pred_check_branch
      %24 = sbr.rel (0) target = $region9
    $region8: #{tpu_custom_call.1} parent=1 // pred_region
      %s26 = ssub.s32 256, 256
      %27 = vsyncadd [#allocation6], %s26
      %s28 = sshll.u32 [#allocation5], 4
      %s29 = int_to_ptr.vmem [resolvable:$true] %s28
      %34 = dma.hbm_to_vmem [thread:$0]  %s1, 256, %s29, [#allocation6], 128, 128, 8
    $region9: #{tpu_custom_call.1} parent=1 // pred_fallthru
      _
    // Predicated region
    $region10: #{tpu_custom_call.1} parent=1 // pred_check
      _
    $region11: #{tpu_custom_call.1} parent=1 // pred_check_branch
      %36 = sbr.rel (0) target = $region13
    $region12: #{tpu_custom_call.1} parent=1 // pred_region
      %s38 = ssub.s32 256, 256
      %39 = vsyncadd [#allocation6], %s38
      %s40 = sshll.u32 [#allocation7], 4
      %s41 = int_to_ptr.vmem [resolvable:$true] %s40
      %46 = dma.hbm_to_vmem [thread:$0]  %s2, 256, %s41, [#allocation6], 128, 128, 8
    $region13: #{tpu_custom_call.1} parent=1 // pred_fallthru
      _
    // Predicated region
    $region14: #{tpu_custom_call.1} parent=1 // pred_check
      _
    $region15: #{tpu_custom_call.1} parent=1 // pred_check_branch
      %48 = sbr.rel (0) target = $region17
    $region16: #{tpu_custom_call.1} parent=1 // pred_region
      %49 = dma.done [#allocation3], 256
    $region17: #{tpu_custom_call.1} parent=1 // pred_fallthru
      _
    // Predicated region
    $region18: #{tpu_custom_call.1} parent=1 // pred_check
      _
    $region19: #{tpu_custom_call.1} parent=1 // pred_check_branch
      %51 = sbr.rel (0) target = $region21
    $region20: #{tpu_custom_call.1} parent=1 // pred_region
      %52 = dma.done [#allocation6], 256
    $region21: #{tpu_custom_call.1} parent=1 // pred_fallthru
      _
    // Predicated region
    $region22: #{tpu_custom_call.1} parent=1 // pred_check
      _
    $region23: #{tpu_custom_call.1} parent=1 // pred_check_branch
      %54 = sbr.rel (0) target = $region25
    $region24: #{tpu_custom_call.1} parent=1 // pred_region
      %55 = dma.done [#allocation6], 256
    $region25: #{tpu_custom_call.1} parent=1 // pred_fallthru
      _
    %v56 = vld [vmem:[#allocation2] sm:$0xff]
    %v57 = vld [vmem:[#allocation2 + $0x8] sm:$0xff]
    %v58 = vmul.f32 %v56, 0.5
    %v59 = vmul.f32 %v57, 0.5
    %v60 = vtanh.pop %v58
    %v61 = vtanh.pop %v59
    %v62 = vadd.f32 %v60, 1.0
    %v63 = vadd.f32 %v61, 1.0
    %v64 = vmul.f32 %v62, 0.5
    %v65 = vmul.f32 %v63, 0.5
    %v66 = vld [vmem:[#allocation7] sm:$0xff]
    %v67 = vld [vmem:[#allocation7 + $0x8] sm:$0xff]
    %v68 = vld [vmem:[#allocation5] sm:$0xff]
    %v69 = vld [vmem:[#allocation5 + $0x8] sm:$0xff]
    %v70 = vadd.f32 %v66, %v64
    %v71 = vadd.f32 %v67, %v65
    %v72 = vmul.f32 %v66, 2.0
    %v73 = vmul.f32 %v67, 2.0
    %v74 = vmul.f32 %v72, %v64
    %v75 = vmul.f32 %v73, %v65
    %v76 = vsub.f32 %v70, %v74
    %v77 = vsub.f32 %v71, %v75
    %vm78 = vcmp.eq.f32.partialorder %v68, 1.0
    %vm79 = vcmp.eq.f32.partialorder %v69, 1.0
    %v80 = vsub.f32 1.0, %v76
    %v81 = vsub.f32 1.0, %v77
    %v82 = vsel %vm78, %v76, %v80
    %v83 = vsel %vm79, %v77, %v81
    %v84 = vlog2.pop %v82
    %v85 = vmul.f32 %v84, 0.6931472
    %v86 = vlog2.pop %v83
    %v87 = vmul.f32 %v86, 0.6931472
    %v88 = vsub.f32 0.0, %v85
    %v89 = vsub.f32 0.0, %v87
    %v90 = vadd.f32 %v88, %v89
    %91 = vst [vmem:[#allocation8] sm:$0xff] %v90
    // Predicated region
    $region26: #{tpu_custom_call.1} parent=1 // pred_check
      _
    $region27: #{tpu_custom_call.1} parent=1 // pred_check_branch
      %93 = sbr.rel (0) target = $region29
    $region28: #{tpu_custom_call.1} parent=1 // pred_region
      %s95 = ssub.s32 128, 128
      %96 = vsyncadd [#allocation4], %s95
      %s98 = sshll.u32 [#allocation8], 4
      %s99 = int_to_ptr.vmem [resolvable:$true] %s98
      %101 = dma.vmem_to_hbm [thread:$0]  %s99, 128, %s3, [#allocation4]
    $region29: #{tpu_custom_call.1} parent=1 // pred_fallthru
      _
    // Predicated region
    $region30: #{tpu_custom_call.1} parent=1 // pred_check
      _
    $region31: #{tpu_custom_call.1} parent=1 // pred_check_branch
      %103 = sbr.rel (0) target = $region33
    $region32: #{tpu_custom_call.1} parent=1 // pred_region
      %104 = dma.done [#allocation4], 128
    $region33: #{tpu_custom_call.1} parent=1 // pred_fallthru
      _
    %105 = vsyncpa [#allocation3], 1
    %106 = vsyncpa [#allocation6], 1
    %107 = vsyncpa [#allocation4], 1

</llo_original>
